<compile_context>
chip_gen: v6e
topology: v6e:2x2x1
jax: 0.10.0
libtpu: 0.0.40
codegen_flags: <defaults>
</compile_context>

<pallas_src>
import jax
import jax.numpy as jnp
from jax import lax
from jax.experimental import pallas as pl
from jax.experimental.pallas import tpu as pltpu


BN_EPS = 1e-5


def _encoder_head_kernel(x_ref, w_ref, gamma_ref, beta_ref, o_ref):
    # x: (B, K_pad) bf16, resident   w: (tn, K_pad) bf16 tile
    # gamma/beta: (1, tn) f32        o: (B, tn) f32
    # Linear (bias omitted; cancelled by BN mean subtraction), f32 accumulation on MXU.
    y = lax.dot_general(
        x_ref[...], w_ref[...],
        dimension_numbers=(((1,), (1,)), ((), ())),
        preferred_element_type=jnp.float32)

    # BatchNorm1d (training mode): per-feature batch mean / biased variance.
    # The full batch B lives in this block, so per-feature stats are exact per T tile.
    mean = jnp.mean(y, axis=0, keepdims=True)
    centered = y - mean
    var = jnp.mean(centered * centered, axis=0, keepdims=True)
    scale = lax.rsqrt(var + BN_EPS) * gamma_ref[...]        # fold gamma into scale
    o_ref[...] = (centered * scale + beta_ref[...]).astype(o_ref.dtype)


def _pick_tn(T_pad, tn_max):
    tn = min(tn_max, T_pad)
    # Prefer >= 2 T tiles (v7x megacore) when a 128-aligned split exists.
    if T_pad // tn < 2 and T_pad >= 256 and (T_pad // 2) % 128 == 0:
        tn = T_pad // 2
    return tn


def prepare_encoder_params(weight, gamma, beta, *, tn=512):
    """One-time init-side prep: bf16 cast + padding of the Linear weight and
    reshape/pad of the BN affine params. Call once, reuse across forwards."""
    T, F_in = weight.shape
    K_pad = pl.cdiv(F_in, 128) * 128
    T_pad = pl.cdiv(max(T, 128), 128) * 128
    tn = _pick_tn(T_pad, tn)

    w_b = weight.astype(jnp.bfloat16)
    g = gamma.astype(jnp.float32)
    bt = beta.astype(jnp.float32)
    if K_pad != F_in:
        w_b = jnp.pad(w_b, ((0, 0), (0, K_pad - F_in)))
    if T_pad != T:
        w_b = jnp.pad(w_b, ((0, T_pad - T), (0, 0)))
        g = jnp.pad(g, (0, T_pad - T), constant_values=1.0)
        bt = jnp.pad(bt, (0, T_pad - T))

    return {
        "w": w_b,                         # (T_pad, K_pad) bf16
        "gamma": g.reshape(1, T_pad),     # (1, T_pad) f32
        "beta": bt.reshape(1, T_pad),     # (1, T_pad) f32
        "T": T, "F_in": F_in, "K_pad": K_pad, "T_pad": T_pad, "tn": tn,
    }


def encoder_cnn_head(features_nchw, params, bias=None):
    """features_nchw: (B, C, 1, 1) f32 (stand-in for resnet152 output).
    params: output of prepare_encoder_params (pre-cast / pre-padded).
    bias accepted for API parity; mathematically cancelled by training-mode BN.
    Returns (B, target_size) f32."""
    del bias  # exactly cancelled by the BN mean subtraction
    B = features_nchw.shape[0]
    x = features_nchw.reshape(B, -1)                 # view(B, -1)
    F_in = params["F_in"]
    K_pad = params["K_pad"]
    T = params["T"]
    T_pad = params["T_pad"]
    tn = params["tn"]

    # x is tiny (~B*K_pad*2 bytes); per-forward cast/pad is negligible.
    x_b = x.astype(jnp.bfloat16)
    if K_pad != F_in:
        x_b = jnp.pad(x_b, ((0, 0), (0, K_pad - F_in)))

    n_t = T_pad // tn

    cost = pl.CostEstimate(
        flops=2 * B * K_pad * T_pad,
        transcendentals=0,
        bytes_accessed=(B * K_pad * 2) + (T_pad * K_pad * 2)
                       + (B * T_pad * 4) + (2 * T_pad * 4),
    )

    out = pl.pallas_call(
        _encoder_head_kernel,
        out_shape=jax.ShapeDtypeStruct((B, T_pad), jnp.float32),
        grid_spec=pltpu.PrefetchScalarGridSpec(
            num_scalar_prefetch=0,
            grid=(n_t,),
            in_specs=[
                pl.BlockSpec((B, K_pad), lambda j: (0, 0)),   # x, fully resident
                pl.BlockSpec((tn, K_pad), lambda j: (j, 0)),  # weight tile (T, F_in)
                pl.BlockSpec((1, tn), lambda j: (0, j)),      # gamma
                pl.BlockSpec((1, tn), lambda j: (0, j)),      # beta
            ],
            out_specs=pl.BlockSpec((B, tn), lambda j: (0, j)),
        ),
        compiler_params=pltpu.CompilerParams(
            dimension_semantics=("parallel",),
            vmem_limit_bytes=32 * 1024 * 1024,
        ),
        cost_estimate=cost,
    )(x_b, params["w"], params["gamma"], params["beta"])

    return out[:, :T]


def _reference(features_nchw, weight, bias, gamma, beta):
    x = features_nchw.reshape(features_nchw.shape[0], -1).astype(jnp.float32)
    y = x @ weight.T + bias
    mean = jnp.mean(y, axis=0, keepdims=True)
    var = jnp.mean((y - mean) ** 2, axis=0, keepdims=True)
    return (y - mean) / jnp.sqrt(var + BN_EPS) * gamma + beta


if __name__ == "__main__":
    # Small shapes consistent with the module (real model: in_features=2048).
    B, in_features, target_size = 8, 512, 256

    key = jax.random.PRNGKey(0)
    k_feat, k_w = jax.random.split(key)

    # Stand-in for resnet152 output features, NCHW (B, C, 1, 1).
    features = jax.random.normal(k_feat, (B, in_features, 1, 1), dtype=jnp.float32)

    # Deterministic parameter init matching EncoderCNN.init_weights():
    #   linear.weight ~ N(0, 0.02), linear.bias = 0; BN defaults gamma=1, beta=0.
    weight = 0.02 * jax.random.normal(k_w, (target_size, in_features), dtype=jnp.float32)
    bias = jnp.zeros((target_size,), dtype=jnp.float32)
    gamma = jnp.ones((target_size,), dtype=jnp.float32)
    beta = jnp.zeros((target_size,), dtype=jnp.float32)

    # One-time param prep (bf16 cast / padding hoisted out of the forward path).
    params = prepare_encoder_params(weight, gamma, beta)

    out = encoder_cnn_head(features, params, bias)
    out = jax.block_until_ready(out)

    ref = _reference(features, weight, bias, gamma, beta)
    assert out.shape == (B, target_size)
    # bf16 operands -> loosened tolerance; BN renormalization keeps error small.
    assert jnp.allclose(out, ref, atol=2e-2, rtol=2e-2), "mismatch vs reference"

    print("KERNEL_OK")
</pallas_src>

<mosaic_0001>
module attributes {stable_mosaic.version = 11 : i64} {
  func.func @_encoder_head_kernel(%arg0: i32, %arg1: memref<8x512xbf16, #tpu.memory_space<vmem>>, %arg2: memref<128x512xbf16, #tpu.memory_space<vmem>>, %arg3: memref<1x128xf32, #tpu.memory_space<vmem>>, %arg4: memref<1x128xf32, #tpu.memory_space<vmem>>, %arg5: memref<8x128xf32, #tpu.memory_space<vmem>>) attributes {dimension_semantics = [#tpu.dimension_semantics<parallel>], iteration_bounds = array<i64: 2>, scalar_prefetch = 0 : i64, scratch_operands = 0 : i64, tpu.core_type = #tpu.core_type<tc>, window_params = [{pipeline_mode = #tpu.pipeline_mode<synchronous>, transform_indices = @transform_0, window_bounds = array<i64: 8, 512>}, {transform_indices = @transform_1, window_bounds = array<i64: 128, 512>}, {transform_indices = @transform_2, window_bounds = array<i64: 1, 128>}, {transform_indices = @transform_3, window_bounds = array<i64: 1, 128>}, {transform_indices = @transform_4, window_bounds = array<i64: 8, 128>}]} {
    %c0 = arith.constant 0 : index
    %c0_0 = arith.constant 0 : index
    %0 = vector.load %arg1[%c0, %c0_0] : memref<8x512xbf16, #tpu.memory_space<vmem>>, vector<8x512xbf16>
    %c0_1 = arith.constant 0 : index
    %c0_2 = arith.constant 0 : index
    %1 = vector.load %arg2[%c0_1, %c0_2] : memref<128x512xbf16, #tpu.memory_space<vmem>>, vector<128x512xbf16>
    %cst = arith.constant dense<0.000000e+00> : vector<8x128xf32>
    %2 = tpu.matmul %0, %1, %cst {dimension_numbers = #tpu.dot_dimension_numbers<[1], [1], [0], [0], [0, 0, 1, 0], [], []>} : vector<8x512xbf16>, vector<128x512xbf16>, vector<8x128xf32> -> vector<8x128xf32>
    %cst_3 = arith.constant dense<0.000000e+00> : vector<128xf32>
    %3 = vector.multi_reduction <add>, %2, %cst_3 [0] : vector<8x128xf32> to vector<128xf32>
    %4 = vector.shape_cast %3 : vector<128xf32> to vector<1x128xf32>
    %cst_4 = arith.constant 8.000000e+00 : f32
    %5 = vector.broadcast %cst_4 : f32 to vector<1x128xf32>
    %6 = arith.divf %4, %5 : vector<1x128xf32>
    %7 = vector.broadcast %6 : vector<1x128xf32> to vector<8x128xf32>
    %8 = arith.subf %2, %7 : vector<8x128xf32>
    %9 = arith.mulf %8, %8 : vector<8x128xf32>
    %cst_5 = arith.constant dense<0.000000e+00> : vector<128xf32>
    %10 = vector.multi_reduction <add>, %9, %cst_5 [0] : vector<8x128xf32> to vector<128xf32>
    %11 = vector.shape_cast %10 : vector<128xf32> to vector<1x128xf32>
    %cst_6 = arith.constant 8.000000e+00 : f32
    %12 = vector.broadcast %cst_6 : f32 to vector<1x128xf32>
    %13 = arith.divf %11, %12 : vector<1x128xf32>
    %cst_7 = arith.constant 9.99999974E-6 : f32
    %14 = vector.broadcast %cst_7 : f32 to vector<1x128xf32>
    %15 = arith.addf %13, %14 : vector<1x128xf32>
    %16 = math.rsqrt %15 : vector<1x128xf32>
    %c0_8 = arith.constant 0 : index
    %c0_9 = arith.constant 0 : index
    %17 = vector.load %arg3[%c0_8, %c0_9] : memref<1x128xf32, #tpu.memory_space<vmem>>, vector<1x128xf32>
    %18 = arith.mulf %16, %17 : vector<1x128xf32>
    %19 = vector.broadcast %18 : vector<1x128xf32> to vector<8x128xf32>
    %20 = arith.mulf %8, %19 : vector<8x128xf32>
    %c0_10 = arith.constant 0 : index
    %c0_11 = arith.constant 0 : index
    %21 = vector.load %arg4[%c0_10, %c0_11] : memref<1x128xf32, #tpu.memory_space<vmem>>, vector<1x128xf32>
    %22 = vector.broadcast %21 : vector<1x128xf32> to vector<8x128xf32>
    %23 = arith.addf %20, %22 : vector<8x128xf32>
    %c0_12 = arith.constant 0 : index
    %c0_13 = arith.constant 0 : index
    %24 = vector.load %arg5[%c0_12, %c0_13] : memref<8x128xf32, #tpu.memory_space<vmem>>, vector<8x128xf32>
    tpu.vector_store %arg5[%c0_12, %c0_13], %23 {strides = array<i32>} : memref<8x128xf32, #tpu.memory_space<vmem>>, vector<8x128xf32>,
    return
  }
  func.func @transform_0(%arg0: i32) -> (i32, i32) {
    %c0_i32 = arith.constant 0 : i32
    %c0_i32_0 = arith.constant 0 : i32
    %c0_i32_1 = arith.constant 0 : i32
    return %c0_i32, %c0_i32_0 : i32, i32
  }
  func.func @transform_1(%arg0: i32) -> (i32, i32) {
    %c0_i32 = arith.constant 0 : i32
    %c0_i32_0 = arith.constant 0 : i32
    return %arg0, %c0_i32 : i32, i32
  }
  func.func @transform_2(%arg0: i32) -> (i32, i32) {
    %c0_i32 = arith.constant 0 : i32
    %c0_i32_0 = arith.constant 0 : i32
    return %c0_i32, %arg0 : i32, i32
  }
  func.func @transform_3(%arg0: i32) -> (i32, i32) {
    %c0_i32 = arith.constant 0 : i32
    %c0_i32_0 = arith.constant 0 : i32
    return %c0_i32, %arg0 : i32, i32
  }
  func.func @transform_4(%arg0: i32) -> (i32, i32) {
    %c0_i32 = arith.constant 0 : i32
    %c0_i32_0 = arith.constant 0 : i32
    return %c0_i32, %arg0 : i32, i32
  }
}

</mosaic_0001>

<llo_original>
// kernel: tpu_custom_call.1
$region0: #{tpu_custom_call.1}
  #allocation0 [shape = 'u32[]', space=smem, size = 0x4, offset = 0x4, fixed_abs, tag = 'smem constant byte address 0x4 - core index']
  #allocation1 [shape = 'u32[144,128]{1,0:T(1,128)}', space=vmem, size = 0x12000, scoped, tag = 'internal scratch']
  %s0 = inlined_call_operand.hbm [shape: bf16[8,512], index: 0, kind: input, shape index: {}]
  %s1 = inlined_call_operand.hbm [shape: bf16[256,512], index: 1, kind: input, shape index: {}]
  %s2 = inlined_call_operand.vmem [shape: f32[1,256], index: 2, kind: input, shape index: {}]
  %s3 = inlined_call_operand.vmem [shape: f32[1,256], index: 3, kind: input, shape index: {}]
  %s4 = inlined_call_operand.hbm [shape: f32[8,256], index: 4, kind: output, shape index: {}]
  %s5 = sld [smem:[#allocation0]]
  $region57: #{tpu_custom_call.1} parent=0
    _
  %s7 = ssub.s32 1, %s5
  %s8 = scalar_select 0, %s7, %s5
  $region1: #{tpu_custom_call.1} parent=0
    #allocation2 [shape = 'u8[8192]{0}', space=vmem, size = 0x2000, scoped, tag = 'input window, operand 0, single buffered']
    #allocation3 [shape = 's32[2]{0}', space=sflag, size = 0x8, scoped, tag = 'scoped memory for tpu_custom_call.1']
    #allocation4 [shape = 's32[2]{0}', space=sflag, size = 0x8, scoped, tag = 'scoped memory for tpu_custom_call.1']
    #allocation5 [shape = 'u8[262144]{0}', space=vmem, size = 0x40000, scoped, tag = 'input window, operand 1']
    #allocation6 [shape = 's32[2]{0}', space=sflag, size = 0x8, scoped, tag = 'scoped memory for tpu_custom_call.1']
    #allocation7 [shape = 'u8[8192]{0}', space=vmem, size = 0x2000, scoped, tag = 'output window, operand 0']
    %9 = vsyncpa [#allocation3], 0
    %10 = vsyncpa [#allocation6], 0
    %s11 = scalar_lea.sflag [#allocation6], 1
    %12 = vsyncpa %s11, 0
    %13 = vsyncpa [#allocation4], 0
    %s14 = scalar_lea.sflag [#allocation4], 1
    %15 = vsyncpa %s14, 0
    loop: start=0, step=1, limit=4
    $region2: #{tpu_custom_call.1} parent=1 // loop_pre_header
      _
    $region3: #{tpu_custom_call.1} parent=1 // loop_header
      %s17 = sphi 0, %s21
      %p18 = scmp.ge.s32.totalorder %s17, 4
      %s25 = sphi 0, %s25
      %s27 = sphi 0, %s25
      %s28 = sphi 0, %s27
      %s42 = sphi 0, %s28
      %s48 = sphi 0, %s50
      %s51 = sphi 0, %s48
      %s52 = sphi 0, %s51
      %s68 = sphi 0, %s52
      %s74 = sphi 0, %s76
      %s77 = sphi 0, %s74
      %s78 = sphi 0, %s77
      %s94 = sphi 0, %s78
      %s100 = sphi 0, %s102
      %s103 = sphi 0, %s100
      %s104 = sphi 0, %s103
      %s120 = sphi 0, %s104
      %s126 = sphi 0, %s128
      %s129 = sphi 0, %s126
      %s130 = sphi 0, %s129
      %s146 = sphi 0, %s130
    $region4: #{tpu_custom_call.1} parent=1 // loop_header_branch
      %20 = sbr.rel (%p18) target = $region8
    $region5: #{tpu_custom_call.1} parent=1 // loop_body
      %s22 = ssub.s32 %s17, 1
      %s23 = ssub.s32 %s17, 2
      %s24 = sadd.s32 %s17, 1
      %s26 = sadd.s32 %s25, 1
      %p29 = scmp.eq.s32.totalorder %s17, 1
      %p30 = scmp.ne.s32.totalorder %s25, %s27
      %p31 = scmp.eq.s32.totalorder %s17, 0
      %p32 = por %p30, %p31
      %p33 = scmp.ne.s32.totalorder %s25, %s27
      %p34 = scmp.eq.s32.totalorder %s22, 1
      %p35 = por %p33, %p34
      %p36 = scmp.ne.s32.totalorder %s27, %s28
      %p37 = scmp.eq.s32.totalorder %s22, 0
      %p38 = por %p36, %p37
      %p39 = scmp.ne.s32.totalorder %s27, %s28
      %p40 = scmp.eq.s32.totalorder %s23, 1
      %p41 = por %p39, %p40
      %p43 = scmp.ne.s32.totalorder %s28, %s42
      %p44 = scmp.eq.s32.totalorder %s23, 0
      %p45 = por %p43, %p44
      %s46 = ssub.s32 %s17, %s24
      %p47 = scmp.eq.s32.totalorder %s46, 0
      %s49 = sadd.s32 %s48, 1
      %s50 = scalar_select %p47, %s48, %s49
      %p53 = pneg %p47
      %p54 = scmp.eq.s32.totalorder %s17, 1
      %p55 = por %p53, %p54
      %p56 = scmp.ne.s32.totalorder %s48, %s51
      %p57 = scmp.eq.s32.totalorder %s17, 0
      %p58 = por %p56, %p57
      %p59 = scmp.ne.s32.totalorder %s48, %s51
      %p60 = scmp.eq.s32.totalorder %s22, 1
      %p61 = por %p59, %p60
      %p62 = scmp.ne.s32.totalorder %s51, %s52
      %p63 = scmp.eq.s32.totalorder %s22, 0
      %p64 = por %p62, %p63
      %p65 = scmp.ne.s32.totalorder %s51, %s52
      %p66 = scmp.eq.s32.totalorder %s23, 1
      %p67 = por %p65, %p66
      %p69 = scmp.ne.s32.totalorder %s52, %s68
      %p70 = scmp.eq.s32.totalorder %s23, 0
      %p71 = por %p69, %p70
      %s72 = ssub.s32 %s17, %s24
      %p73 = scmp.eq.s32.totalorder %s72, 0
      %s75 = sadd.s32 %s74, 1
      %s76 = scalar_select %p73, %s74, %s75
      %p79 = pneg %p73
      %p80 = scmp.eq.s32.totalorder %s17, 1
      %p81 = por %p79, %p80
      %p82 = scmp.ne.s32.totalorder %s74, %s77
      %p83 = scmp.eq.s32.totalorder %s17, 0
      %p84 = por %p82, %p83
      %p85 = scmp.ne.s32.totalorder %s74, %s77
      %p86 = scmp.eq.s32.totalorder %s22, 1
      %p87 = por %p85, %p86
      %p88 = scmp.ne.s32.totalorder %s77, %s78
      %p89 = scmp.eq.s32.totalorder %s22, 0
      %p90 = por %p88, %p89
      %p91 = scmp.ne.s32.totalorder %s77, %s78
      %p92 = scmp.eq.s32.totalorder %s23, 1
      %p93 = por %p91, %p92
      %p95 = scmp.ne.s32.totalorder %s78, %s94
      %p96 = scmp.eq.s32.totalorder %s23, 0
      %p97 = por %p95, %p96
      %s98 = ssub.s32 %s17, %s24
      %p99 = scmp.eq.s32.totalorder %s98, 0
      %s101 = sadd.s32 %s100, 1
      %s102 = scalar_select %p99, %s100, %s101
      %p105 = pneg %p99
      %p106 = scmp.eq.s32.totalorder %s17, 1
      %p107 = por %p105, %p106
      %p108 = scmp.ne.s32.totalorder %s100, %s103
      %p109 = scmp.eq.s32.totalorder %s17, 0
      %p110 = por %p108, %p109
      %p111 = scmp.ne.s32.totalorder %s100, %s103
      %p112 = scmp.eq.s32.totalorder %s22, 1
      %p113 = por %p111, %p112
      %p114 = scmp.ne.s32.totalorder %s103, %s104
      %p115 = scmp.eq.s32.totalorder %s22, 0
      %p116 = por %p114, %p115
      %p117 = scmp.ne.s32.totalorder %s103, %s104
      %p118 = scmp.eq.s32.totalorder %s23, 1
      %p119 = por %p117, %p118
      %p121 = scmp.ne.s32.totalorder %s104, %s120
      %p122 = scmp.eq.s32.totalorder %s23, 0
      %p123 = por %p121, %p122
      %s124 = ssub.s32 %s17, %s24
      %p125 = scmp.eq.s32.totalorder %s124, 0
      %s127 = sadd.s32 %s126, 1
      %s128 = scalar_select %p125, %s126, %s127
      %p131 = pneg %p125
      %p132 = scmp.eq.s32.totalorder %s17, 1
      %p133 = por %p131, %p132
      %p134 = scmp.ne.s32.totalorder %s126, %s129
      %p135 = scmp.eq.s32.totalorder %s17, 0
      %p136 = por %p134, %p135
      %p137 = scmp.ne.s32.totalorder %s126, %s129
      %p138 = scmp.eq.s32.totalorder %s22, 1
      %p139 = por %p137, %p138
      %p140 = scmp.ne.s32.totalorder %s129, %s130
      %p141 = scmp.eq.s32.totalorder %s22, 0
      %p142 = por %p140, %p141
      %p143 = scmp.ne.s32.totalorder %s129, %s130
      %p144 = scmp.eq.s32.totalorder %s23, 1
      %p145 = por %p143, %p144
      %p147 = scmp.ne.s32.totalorder %s130, %s146
      %p148 = scmp.eq.s32.totalorder %s23, 0
      %p149 = por %p147, %p148
      %p150 = scmp.le.s32.totalorder 1, %s17
      %p151 = scmp.lt.s32.totalorder %s17, 3
      %p152 = pnand %p150, %p151
      %p153 = pneg %p152
      // Predicated region
      $region9: #{tpu_custom_call.1} parent=5 // pred_check
        _
      $region10: #{tpu_custom_call.1} parent=5 // pred_check_branch
        %155 = sbr.rel (%p152) target = $region12
      $region11: #{tpu_custom_call.1} parent=5 // pred_region
        %s156 = ssub.s32 %s17, 1
        // Predicated region
        $region13: #{tpu_custom_call.1} parent=11 // pred_check
          %p157 = pneg %p38
        $region14: #{tpu_custom_call.1} parent=11 // pred_check_branch
          %159 = sbr.rel (%p157) target = $region16
        $region15: #{tpu_custom_call.1} parent=11 // pred_region
          %s161 = ssub.s32 256, 256
          %162 = vsyncadd [#allocation3], %s161
          %s164 = sshll.u32 [#allocation2], 4
          %s165 = int_to_ptr.vmem [resolvable:$true] %s164
          %167 = dma.hbm_to_vmem [thread:$0]  %s0, 256, %s165, [#allocation3]
        $region16: #{tpu_custom_call.1} parent=11 // pred_fallthru
          _
      $region12: #{tpu_custom_call.1} parent=5 // pred_fallthru
        _
      %p168 = scmp.lt.s32.totalorder %s17, 2
      // Predicated region
      $region17: #{tpu_custom_call.1} parent=5 // pred_check
        %p169 = pneg %p168
      $region18: #{tpu_custom_call.1} parent=5 // pred_check_branch
        %171 = sbr.rel (%p169) target = $region20
      $region19: #{tpu_custom_call.1} parent=5 // pred_region
        // Predicated region
        $region21: #{tpu_custom_call.1} parent=19 // pred_check
          %p172 = pneg %p58
        $region22: #{tpu_custom_call.1} parent=19 // pred_check_branch
          %174 = sbr.rel (%p172) target = $region24
        $region23: #{tpu_custom_call.1} parent=19 // pred_region
          %s175 = sand.u32 %s48, 1
          %s176 = scalar_lea.sflag [#allocation6], %s175
          %s177 = sand.u32 %s48, 1
          %s178 = smul.addr %s177, 256
          %s179 = scalar_lea.vmem [#allocation5], %s178
          %s180 = smul.u32 16, %s17
          %s182 = ssub.s32 4096, 4096
          %183 = vsyncadd %s176, %s182
          %s184 = smul.addr %s180, 4
          %s185 = smul.addr %s184, 64
          %s186 = scalar_lea.hbm %s1, %s185
          %s187 = sshll.u32 %s179, 4
          %s188 = int_to_ptr.vmem [resolvable:$true] %s187
          %193 = dma.hbm_to_vmem [thread:$0]  %s186, 4096, %s188, %s176, 256, 256, 16
        $region24: #{tpu_custom_call.1} parent=19 // pred_fallthru
          _
        // Predicated region
        $region25: #{tpu_custom_call.1} parent=19 // pred_check
          %p194 = pneg %p84
        $region26: #{tpu_custom_call.1} parent=19 // pred_check_branch
          %196 = sbr.rel (%p194) target = $region28
        $region27: #{tpu_custom_call.1} parent=19 // pred_region
          %p197 = scmp.lt.s32.totalorder %s17, 1
          %s198 = scalar_select %p197, %s17, 1
          %s199 = scalar_lea.vmem %s2, %s198
        $region28: #{tpu_custom_call.1} parent=19 // pred_fallthru
          _
        // Predicated region
        $region29: #{tpu_custom_call.1} parent=19 // pred_check
          %p200 = pneg %p110
        $region30: #{tpu_custom_call.1} parent=19 // pred_check_branch
          %202 = sbr.rel (%p200) target = $region32
        $region31: #{tpu_custom_call.1} parent=19 // pred_region
          %p203 = scmp.lt.s32.totalorder %s17, 1
          %s204 = scalar_select %p203, %s17, 1
          %s205 = scalar_lea.vmem %s3, %s204
        $region32: #{tpu_custom_call.1} parent=19 // pred_fallthru
          _
      $region20: #{tpu_custom_call.1} parent=5 // pred_fallthru
        _
      %p206 = scmp.le.s32.totalorder 1, %s17
      %p207 = scmp.lt.s32.totalorder %s17, 3
      %p208 = pnand %p206, %p207
      %p209 = pneg %p208
      // Predicated region
      $region33: #{tpu_custom_call.1} parent=5 // pred_check
        _
      $region34: #{tpu_custom_call.1} parent=5 // pred_check_branch
        %211 = sbr.rel (%p208) target = $region36
      $region35: #{tpu_custom_call.1} parent=5 // pred_region
        %s212 = ssub.s32 %s17, 1
        // Predicated region
        $region37: #{tpu_custom_call.1} parent=35 // pred_check
          %p213 = pneg %p38
        $region38: #{tpu_custom_call.1} parent=35 // pred_check_branch
          %215 = sbr.rel (%p213) target = $region40
        $region39: #{tpu_custom_call.1} parent=35 // pred_region
          %216 = dma.done [#allocation3], 256
        $region40: #{tpu_custom_call.1} parent=35 // pred_fallthru
          _
        %s217 = sand.u32 %s51, 1
        %s218 = scalar_lea.sflag [#allocation6], %s217
        %s219 = sand.u32 %s51, 1
        %s220 = smul.addr %s219, 256
        %s221 = scalar_lea.vmem [#allocation5], %s220
        // Predicated region
        $region41: #{tpu_custom_call.1} parent=35 // pred_check
          %p222 = pneg %p64
        $region42: #{tpu_custom_call.1} parent=35 // pred_check_branch
          %224 = sbr.rel (%p222) target = $region44
        $region43: #{tpu_custom_call.1} parent=35 // pred_region
          %225 = dma.done %s218, 4096
        $region44: #{tpu_custom_call.1} parent=35 // pred_fallthru
          _
        %p226 = pneg %p38
        %p227 = pneg %p35
        %s228 = sand.u32 %s51, 1
        %s229 = scalar_lea.sflag [#allocation6], %s228
        %s230 = sand.u32 %s51, 1
        %s231 = smul.addr %s230, 256
        %s232 = scalar_lea.vmem [#allocation5], %s231
        %p233 = pneg %p64
        %p234 = pneg %p61
        %p235 = scmp.lt.s32.totalorder %s22, 1
        %s236 = scalar_select %p235, %s22, 1
        %s237 = scalar_lea.vmem %s2, %s236
        %p238 = pneg %p90
        %p239 = pneg %p87
        %p240 = scmp.lt.s32.totalorder %s22, 1
        %s241 = scalar_select %p240, %s22, 1
        %s242 = scalar_lea.vmem %s3, %s241
        %p243 = pneg %p116
        %p244 = pneg %p113
        %p245 = pneg %p142
        %p246 = pneg %p139
        %s247 = sand.u32 %s129, 1
        %s248 = scalar_lea.sflag [#allocation4], %s247
        %s249 = sand.u32 %s129, 1
        %s250 = smul.addr %s249, 8
        %s251 = scalar_lea.vmem [#allocation7], %s250
        %s252 = smul.u32 16, %s22
        %p253 = scmp.lt.s32.totalorder %s22, 1
        %s254 = scalar_select %p253, %s22, 1
        %s255 = scalar_lea.vmem %s2, %s254
        %p256 = scmp.lt.s32.totalorder %s22, 1
        %s257 = scalar_select %p256, %s22, 1
        %s258 = scalar_lea.vmem %s3, %s257
        %v260 = vld [vmem:[#allocation2] sm:$0xff]
        %v261 = vld [vmem:[#allocation2 + $0x8] sm:$0xff]
        %v262 = vld [vmem:[%s221] sm:$0xff]
        %v263 = vld [vmem:[%s221 + $0x8] sm:$0xff]
        %v264 = vld [vmem:[%s221 + $0x10] sm:$0xff]
        %v265 = vld [vmem:[%s221 + $0x18] sm:$0xff]
        %v266 = vld [vmem:[%s221 + $0x20] sm:$0xff]
        %v267 = vld [vmem:[%s221 + $0x28] sm:$0xff]
        %v268 = vld [vmem:[%s221 + $0x30] sm:$0xff]
        %v269 = vld [vmem:[%s221 + $0x38] sm:$0xff]
        %v270 = vld [vmem:[%s221 + $0x40] sm:$0xff]
        %v271 = vld [vmem:[%s221 + $0x48] sm:$0xff]
        %v272 = vld [vmem:[%s221 + $0x50] sm:$0xff]
        %v273 = vld [vmem:[%s221 + $0x58] sm:$0xff]
        %v274 = vld [vmem:[%s221 + $0x60] sm:$0xff]
        %v275 = vld [vmem:[%s221 + $0x68] sm:$0xff]
        %v276 = vld [vmem:[%s221 + $0x70] sm:$0xff]
        %v277 = vld [vmem:[%s221 + $0x78] sm:$0xff]
        %v278 = vld [vmem:[%s221 + $0x80] sm:$0xff]
        %v279 = vld [vmem:[%s221 + $0x88] sm:$0xff]
        %v280 = vld [vmem:[%s221 + $0x90] sm:$0xff]
        %v281 = vld [vmem:[%s221 + $0x98] sm:$0xff]
        %v282 = vld [vmem:[%s221 + $0xa0] sm:$0xff]
        %v283 = vld [vmem:[%s221 + $0xa8] sm:$0xff]
        %v284 = vld [vmem:[%s221 + $0xb0] sm:$0xff]
        %v285 = vld [vmem:[%s221 + $0xb8] sm:$0xff]
        %v286 = vld [vmem:[%s221 + $0xc0] sm:$0xff]
        %v287 = vld [vmem:[%s221 + $0xc8] sm:$0xff]
        %v288 = vld [vmem:[%s221 + $0xd0] sm:$0xff]
        %v289 = vld [vmem:[%s221 + $0xd8] sm:$0xff]
        %v290 = vld [vmem:[%s221 + $0xe0] sm:$0xff]
        %v291 = vld [vmem:[%s221 + $0xe8] sm:$0xff]
        %v292 = vld [vmem:[%s221 + $0xf0] sm:$0xff]
        %v293 = vld [vmem:[%s221 + $0xf8] sm:$0xff]
        %v296 = vunpack.c.l.b16 %v260
        %v297 = vunpack.c.h.b16 %v260
        %v298 = vunpack.c.l.b16 %v261
        %v299 = vunpack.c.h.b16 %v261
        %v300 = vpack.c.b16 %v296, %v296
        %v301 = vpack.c.b16 %v297, %v297
        %v302 = vpack.c.b16 %v298, %v298
        %v303 = vpack.c.b16 %v299, %v299
        %v340 = vunpack.c.l.b16 %v262
        %v341 = vunpack.c.h.b16 %v262
        %v342 = vunpack.c.l.b16 %v263
        %v343 = vunpack.c.h.b16 %v263
        %v344 = vunpack.c.l.b16 %v264
        %v345 = vunpack.c.h.b16 %v264
        %v346 = vunpack.c.l.b16 %v265
        %v347 = vunpack.c.h.b16 %v265
        %v348 = vunpack.c.l.b16 %v266
        %v349 = vunpack.c.h.b16 %v266
        %v350 = vunpack.c.l.b16 %v267
        %v351 = vunpack.c.h.b16 %v267
        %v352 = vunpack.c.l.b16 %v268
        %v353 = vunpack.c.h.b16 %v268
        %v354 = vunpack.c.l.b16 %v269
        %v355 = vunpack.c.h.b16 %v269
        %v356 = vunpack.c.l.b16 %v270
        %v357 = vunpack.c.h.b16 %v270
        %v358 = vunpack.c.l.b16 %v271
        %v359 = vunpack.c.h.b16 %v271
        %v360 = vunpack.c.l.b16 %v272
        %v361 = vunpack.c.h.b16 %v272
        %v362 = vunpack.c.l.b16 %v273
        %v363 = vunpack.c.h.b16 %v273
        %v364 = vunpack.c.l.b16 %v274
        %v365 = vunpack.c.h.b16 %v274
        %v366 = vunpack.c.l.b16 %v275
        %v367 = vunpack.c.h.b16 %v275
        %v368 = vunpack.c.l.b16 %v276
        %v369 = vunpack.c.h.b16 %v276
        %v370 = vunpack.c.l.b16 %v277
        %v371 = vunpack.c.h.b16 %v277
        %v372 = vunpack.c.l.b16 %v278
        %v373 = vunpack.c.h.b16 %v278
        %v374 = vunpack.c.l.b16 %v279
        %v375 = vunpack.c.h.b16 %v279
        %v376 = vunpack.c.l.b16 %v280
        %v377 = vunpack.c.h.b16 %v280
        %v378 = vunpack.c.l.b16 %v281
        %v379 = vunpack.c.h.b16 %v281
        %v380 = vunpack.c.l.b16 %v282
        %v381 = vunpack.c.h.b16 %v282
        %v382 = vunpack.c.l.b16 %v283
        %v383 = vunpack.c.h.b16 %v283
        %v384 = vunpack.c.l.b16 %v284
        %v385 = vunpack.c.h.b16 %v284
        %v386 = vunpack.c.l.b16 %v285
        %v387 = vunpack.c.h.b16 %v285
        %v388 = vunpack.c.l.b16 %v286
        %v389 = vunpack.c.h.b16 %v286
        %v390 = vunpack.c.l.b16 %v287
        %v391 = vunpack.c.h.b16 %v287
        %v392 = vunpack.c.l.b16 %v288
        %v393 = vunpack.c.h.b16 %v288
        %v394 = vunpack.c.l.b16 %v289
        %v395 = vunpack.c.h.b16 %v289
        %v396 = vunpack.c.l.b16 %v290
        %v397 = vunpack.c.h.b16 %v290
        %v398 = vunpack.c.l.b16 %v291
        %v399 = vunpack.c.h.b16 %v291
        %v400 = vunpack.c.l.b16 %v292
        %v401 = vunpack.c.h.b16 %v292
        %v402 = vunpack.c.l.b16 %v293
        %v403 = vunpack.c.h.b16 %v293
        %v404 = vpack.c.b16 %v344, %v340
        %v405 = vpack.c.b16 %v345, %v341
        %v406 = vpack.c.b16 %v346, %v342
        %v407 = vpack.c.b16 %v347, %v343
        %v408 = vpack.c.b16 %v352, %v348
        %v409 = vpack.c.b16 %v353, %v349
        %v410 = vpack.c.b16 %v354, %v350
        %v411 = vpack.c.b16 %v355, %v351
        %v412 = vpack.c.b16 %v360, %v356
        %v413 = vpack.c.b16 %v361, %v357
        %v414 = vpack.c.b16 %v362, %v358
        %v415 = vpack.c.b16 %v363, %v359
        %v416 = vpack.c.b16 %v368, %v364
        %v417 = vpack.c.b16 %v369, %v365
        %v418 = vpack.c.b16 %v370, %v366
        %v419 = vpack.c.b16 %v371, %v367
        %v420 = vpack.c.b16 %v376, %v372
        %v421 = vpack.c.b16 %v377, %v373
        %v422 = vpack.c.b16 %v378, %v374
        %v423 = vpack.c.b16 %v379, %v375
        %v424 = vpack.c.b16 %v384, %v380
        %v425 = vpack.c.b16 %v385, %v381
        %v426 = vpack.c.b16 %v386, %v382
        %v427 = vpack.c.b16 %v387, %v383
        %v428 = vpack.c.b16 %v392, %v388
        %v429 = vpack.c.b16 %v393, %v389
        %v430 = vpack.c.b16 %v394, %v390
        %v431 = vpack.c.b16 %v395, %v391
        %v432 = vpack.c.b16 %v400, %v396
        %v433 = vpack.c.b16 %v401, %v397
        %v434 = vpack.c.b16 %v402, %v398
        %v435 = vpack.c.b16 %v403, %v399
        %468 = vmatprep.subr.bf16.mxu0 %v433
        %469 = vmatpush1.bf16.xpose.msra.mxu0 %v432
        %470 = vmatprep.subr.bf16.mxu0 %v429
        %471 = vmatpush1.bf16.xpose.msra.mxu0 %v428
        %472 = vmatprep.subr.bf16.mxu0 %v425
        %473 = vmatpush1.bf16.xpose.msra.mxu0 %v424
        %474 = vmatprep.subr.bf16.mxu0 %v421
        %475 = vmatpush1.bf16.xpose.msra.mxu0 %v420
        %476 = vmatprep.subr.bf16.mxu0 %v417
        %477 = vmatpush1.bf16.xpose.msra.mxu0 %v416
        %478 = vmatprep.subr.bf16.mxu0 %v413
        %479 = vmatpush1.bf16.xpose.msra.mxu0 %v412
        %480 = vmatprep.subr.bf16.mxu0 %v409
        %481 = vmatpush1.bf16.xpose.msra.mxu0 %v408
        %482 = vmatprep.subr.bf16.mxu0 %v405
        %483 = vmatpush1.bf16.xpose.msra.mxu0 %v404
        %484 = vmatprep.subr.bf16.mxu0 0
        %485 = vmatpush2.bf16.xpose.msra.mxu0 0
        %486 = vmatprep.subr.bf16.mxu0 0
        %487 = vmatpush2.bf16.xpose.msra.mxu0 0
        %488 = vmatprep.subr.bf16.mxu0 0
        %489 = vmatpush2.bf16.xpose.msra.mxu0 0
        %490 = vmatprep.subr.bf16.mxu0 0
        %491 = vmatpush2.bf16.xpose.msra.mxu0 0
        %492 = vmatprep.subr.bf16.mxu0 0
        %493 = vmatpush2.bf16.xpose.msra.mxu0 0
        %494 = vmatprep.subr.bf16.mxu0 0
        %495 = vmatpush2.bf16.xpose.msra.mxu0 0
        %496 = vmatprep.subr.bf16.mxu0 0
        %497 = vmatpush2.bf16.xpose.msra.mxu0 0
        %498 = vmatprep.subr.bf16.mxu0 0
        %499 = vmatpush2.bf16.xpose.msra.mxu0 0
        %500 = vmatprep.mubr.bf16.mxu0 %v301
        %501 = vmatmul.mubr.bf16.gmra.mxu0 %v300
        %v502 = vpop.f32.mrf.mxu0
        %v503 = vadd.f32 0.0, %v502
        %v504 = vpop.f32.mrf.mxu0
        %v505 = vpop.f32.mrf.mxu0
        %v506 = vpop.f32.mrf.mxu0
        %507 = vdwg.mxu0
        %508 = vmatprep.subr.bf16.mxu0 %v435
        %509 = vmatpush1.bf16.xpose.msra.mxu0 %v434
        %510 = vmatprep.subr.bf16.mxu0 %v431
        %511 = vmatpush1.bf16.xpose.msra.mxu0 %v430
        %512 = vmatprep.subr.bf16.mxu0 %v427
        %513 = vmatpush1.bf16.xpose.msra.mxu0 %v426
        %514 = vmatprep.subr.bf16.mxu0 %v423
        %515 = vmatpush1.bf16.xpose.msra.mxu0 %v422
        %516 = vmatprep.subr.bf16.mxu0 %v419
        %517 = vmatpush1.bf16.xpose.msra.mxu0 %v418
        %518 = vmatprep.subr.bf16.mxu0 %v415
        %519 = vmatpush1.bf16.xpose.msra.mxu0 %v414
        %520 = vmatprep.subr.bf16.mxu0 %v411
        %521 = vmatpush1.bf16.xpose.msra.mxu0 %v410
        %522 = vmatprep.subr.bf16.mxu0 %v407
        %523 = vmatpush1.bf16.xpose.msra.mxu0 %v406
        %524 = vmatprep.subr.bf16.mxu0 0
        %525 = vmatpush2.bf16.xpose.msra.mxu0 0
        %526 = vmatprep.subr.bf16.mxu0 0
        %527 = vmatpush2.bf16.xpose.msra.mxu0 0
        %528 = vmatprep.subr.bf16.mxu0 0
        %529 = vmatpush2.bf16.xpose.msra.mxu0 0
        %530 = vmatprep.subr.bf16.mxu0 0
        %531 = vmatpush2.bf16.xpose.msra.mxu0 0
        %532 = vmatprep.subr.bf16.mxu0 0
        %533 = vmatpush2.bf16.xpose.msra.mxu0 0
        %534 = vmatprep.subr.bf16.mxu0 0
        %535 = vmatpush2.bf16.xpose.msra.mxu0 0
        %536 = vmatprep.subr.bf16.mxu0 0
        %537 = vmatpush2.bf16.xpose.msra.mxu0 0
        %538 = vmatprep.subr.bf16.mxu0 0
        %539 = vmatpush2.bf16.xpose.msra.mxu0 0
        %540 = vmatprep.mubr.bf16.mxu0 %v303
        %541 = vmatmul.mubr.bf16.gmra.mxu0 %v302
        %v542 = vpop.f32.mrf.mxu0
        %v543 = vadd.f32 %v503, %v542
        %v544 = vpop.f32.mrf.mxu0
        %v545 = vpop.f32.mrf.mxu0
        %v546 = vpop.f32.mrf.mxu0
        %547 = vdwg.mxu0
        %v548 = vrot.slane %v543, 4
        %v549 = vadd.f32 %v543, %v548
        %v550 = vrot.slane %v549, 2
        %v551 = vadd.f32 %v549, %v550
        %v552 = vrot.slane %v551, 1
        %v553 = vadd.f32 %v551, %v552
        %v554 = vrcp.pop 8.0
        %v555 = vmul.f32 %v553, %v554
        %v556 = vsub.f32 %v543, %v555
        %v557 = vmul.f32 %v556, %v556
        %v558 = vrot.slane %v557, 4
        %v559 = vadd.f32 %v557, %v558
        %v560 = vrot.slane %v559, 2
        %v561 = vadd.f32 %v559, %v560
        %v562 = vrot.slane %v561, 1
        %v563 = vadd.f32 %v561, %v562
        %v564 = vmul.f32 %v563, %v554
        %v565 = vadd.f32 %v564, 1e-05
        %v566 = vrsqrt.pop %v565
        %v567 = vld [vmem:[%s255] sm:$0x1]
        %v568 = vmul.f32 %v566, %v567
        %v569 = vlaneseq
        %v570 = vshrl.u32 %v569, 7
        %v571 = vsub.s32 0, %v570
        %v572 = vrot.slane %v568, %v571
        %v573 = vmul.f32 %v556, %v572
        %v574 = vld [vmem:[%s258] sm:$0x1]
        %v576 = vlaneseq
        %v577 = vshrl.u32 %v576, 7
        %v578 = vsub.s32 0, %v577
        %v579 = vrot.slane %v574, %v578
        %v581 = vadd.f32 %v573, %v579
        %582 = vst [vmem:[%s251] sm:$0xff] %v581
        %s583 = sand.u32 %s129, 1
        %s584 = scalar_lea.sflag [#allocation4], %s583
        %s585 = sand.u32 %s129, 1
        %s586 = smul.addr %s585, 8
        %s587 = scalar_lea.vmem [#allocation7], %s586
        // Predicated region
        $region45: #{tpu_custom_call.1} parent=35 // pred_check
          %p588 = pneg %p139
        $region46: #{tpu_custom_call.1} parent=35 // pred_check_branch
          %590 = sbr.rel (%p588) target = $region48
        $region47: #{tpu_custom_call.1} parent=35 // pred_region
          %s592 = ssub.s32 128, 128
          %593 = vsyncadd %s584, %s592
          %s594 = smul.addr %s22, 128
          %s595 = scalar_lea.hbm %s4, %s594
          %s597 = sshll.u32 %s587, 4
          %s598 = int_to_ptr.vmem [resolvable:$true] %s597
          %600 = dma.vmem_to_hbm [thread:$0]  %s598, 128, %s595, %s584
        $region48: #{tpu_custom_call.1} parent=35 // pred_fallthru
          _
      $region36: #{tpu_custom_call.1} parent=5 // pred_fallthru
        _
      %p601 = scmp.le.s32.totalorder 2, %s17
      // Predicated region
      $region49: #{tpu_custom_call.1} parent=5 // pred_check
        %p602 = pneg %p601
      $region50: #{tpu_custom_call.1} parent=5 // pred_check_branch
        %604 = sbr.rel (%p602) target = $region52
      $region51: #{tpu_custom_call.1} parent=5 // pred_region
        %s605 = ssub.s32 %s17, 2
        // Predicated region
        $region53: #{tpu_custom_call.1} parent=51 // pred_check
          %p606 = pneg %p145
        $region54: #{tpu_custom_call.1} parent=51 // pred_check_branch
          %608 = sbr.rel (%p606) target = $region56
        $region55: #{tpu_custom_call.1} parent=51 // pred_region
          %s609 = sand.u32 %s130, 1
          %s610 = scalar_lea.sflag [#allocation4], %s609
          %s611 = sand.u32 %s130, 1
          %s612 = smul.addr %s611, 8
          %s613 = scalar_lea.vmem [#allocation7], %s612
          %614 = dma.done %s610, 128
        $region56: #{tpu_custom_call.1} parent=51 // pred_fallthru
          _
      $region52: #{tpu_custom_call.1} parent=5 // pred_fallthru
        _
    $region6: #{tpu_custom_call.1} parent=1 // loop_footer
      %s21 = sadd.s32 1, %s17
    $region7: #{tpu_custom_call.1} parent=1 // loop_footer_branch
      %16 = sbr.rel target = $region3
    $region8: #{tpu_custom_call.1} parent=1 // loop_exit
      _
    %615 = vsyncpa [#allocation3], 1
    %s616 = scalar_lea.sflag [#allocation3], 1
    %617 = vsyncpa %s616, 1
    %618 = vsyncpa [#allocation6], 1
    %s619 = scalar_lea.sflag [#allocation6], 1
    %620 = vsyncpa %s619, 1
    %621 = vsyncpa [#allocation4], 1
    %s622 = scalar_lea.sflag [#allocation4], 1
    %623 = vsyncpa %s622, 1

</llo_original>
